<compile_context>
chip_gen: v7x
topology: tpu7x:2x2x1
jax: 0.10.0
libtpu: 0.0.40
codegen_flags: <defaults>
</compile_context>

<pallas_src>
import math

import jax
import jax.numpy as jnp
from jax.experimental import pallas as pl
from jax.experimental.pallas import tpu as pltpu


# Conservative live-VMEM target: 2x double-buffering * (input blocks + output
# block) stays under the default scoped VMEM limit on v5e (16 MiB), v6e and
# v7x; vmem_limit_bytes below adds headroom.
_VMEM_BUDGET_BYTES = 8 * 1024 * 1024
_VMEM_LIMIT_BYTES = 32 * 1024 * 1024


def _make_concat_kernel(flat_sizes):
    """Kernel: copy each input tile into its static lane span of the output."""
    def kernel(*refs):
        o_ref = refs[-1]
        in_refs = refs[:-1]
        off = 0
        for r, f in zip(in_refs, flat_sizes):
            # Static, contiguous lane slice -> pure wide VMEM copy.
            o_ref[:, off:off + f] = r[...]
            off += f
    return kernel


def _pick_row_block(n_rows, f_total, itemsize):
    """Largest row-block that keeps the double-buffered pipeline in budget."""
    # inputs (sum == f_total) + output, each double-buffered by the pipeline.
    per_row = 4 * f_total * itemsize
    rows_fit = max(1, _VMEM_BUDGET_BYTES // per_row)
    if n_rows <= rows_fit:
        return n_rows                      # fold all rows into one block
    tn = max(8, (rows_fit // 8) * 8)       # keep sublane block a multiple of 8
    return min(tn, n_rows)


def concat_pallas(xs, dimension=1):
    """Pallas equivalent of torch.cat(xs, dim=dimension)."""
    assert len(xs) >= 1
    rank = xs[0].ndim
    d = dimension % rank
    dtype = xs[0].dtype
    lead_shape = xs[0].shape[:d]
    tail_shape = xs[0].shape[d + 1:]
    for x in xs:
        assert x.ndim == rank and x.dtype == dtype
        assert x.shape[:d] == lead_shape and x.shape[d + 1:] == tail_shape

    lead = int(math.prod(lead_shape))
    tail = int(math.prod(tail_shape))
    concat_sizes = [int(x.shape[d]) for x in xs]
    c_total = sum(concat_sizes)
    flat_sizes = [c * tail for c in concat_sizes]
    f_total = c_total * tail

    # Lane-dense 2-D views: concat along `d` == concat along flattened last axis.
    flats = [x.reshape(lead, -1) for x in xs]

    tn = _pick_row_block(lead, f_total, jnp.dtype(dtype).itemsize)
    grid = (pl.cdiv(lead, tn),)

    in_specs = [pl.BlockSpec((tn, f), lambda n: (n, 0)) for f in flat_sizes]
    out_specs = pl.BlockSpec((tn, f_total), lambda n: (n, 0))

    out_flat = pl.pallas_call(
        _make_concat_kernel(flat_sizes),
        out_shape=jax.ShapeDtypeStruct((lead, f_total), dtype),
        grid=grid,
        in_specs=in_specs,
        out_specs=out_specs,
        compiler_params=pltpu.CompilerParams(
            dimension_semantics=("parallel",),
            vmem_limit_bytes=_VMEM_LIMIT_BYTES,
        ),
    )(*flats)

    # TODO(synk): for very large feature maps a pure HBM->HBM DMA variant
    # (memory_space=pl.ANY + one pltpu.make_async_copy per input) would skip
    # the VMEM round trip entirely; kept the BlockSpec pipeline for robustness.
    return out_flat.reshape(lead_shape + (c_total,) + tail_shape)


if __name__ == "__main__":
    key = jax.random.PRNGKey(0)
    k1, k2 = jax.random.split(key)

    # Small NCHW inputs with different channel counts (typical YOLO Concat use).
    x1 = jax.random.normal(k1, (2, 4, 16, 16), dtype=jnp.float32)
    x2 = jax.random.normal(k2, (2, 6, 16, 16), dtype=jnp.float32)

    out = concat_pallas([x1, x2], dimension=1)
    out = jax.block_until_ready(out)

    ref = jnp.concatenate([x1, x2], axis=1)
    assert out.shape == ref.shape, (out.shape, ref.shape)
    assert jnp.array_equal(out, ref), "Pallas concat mismatch vs jnp.concatenate"

    print("KERNEL_OK")
</pallas_src>

<mosaic_0001>
module attributes {stable_mosaic.version = 11 : i64} {
  func.func @kernel(%arg0: i32, %arg1: memref<2x1024xf32, #tpu.memory_space<vmem>>, %arg2: memref<2x1536xf32, #tpu.memory_space<vmem>>, %arg3: memref<2x2560xf32, #tpu.memory_space<vmem>>) attributes {dimension_semantics = [#tpu.dimension_semantics<parallel>], iteration_bounds = array<i64: 1>, scalar_prefetch = 0 : i64, scratch_operands = 0 : i64, tpu.core_type = #tpu.core_type<tc>, window_params = [{transform_indices = @transform_0, window_bounds = array<i64: 2, 1024>}, {transform_indices = @transform_1, window_bounds = array<i64: 2, 1536>}, {transform_indices = @transform_2, window_bounds = array<i64: 2, 2560>}]} {
    %c0 = arith.constant 0 : index
    %c0_0 = arith.constant 0 : index
    %0 = vector.load %arg1[%c0, %c0_0] : memref<2x1024xf32, #tpu.memory_space<vmem>>, vector<2x1024xf32>
    %c0_1 = arith.constant 0 : index
    %c0_2 = arith.constant 0 : index
    %1 = vector.load %arg3[%c0_1, %c0_2] : memref<2x2560xf32, #tpu.memory_space<vmem>>, vector<2x1024xf32>
    tpu.vector_store %arg3[%c0_1, %c0_2], %0 {strides = array<i32>} : memref<2x2560xf32, #tpu.memory_space<vmem>>, vector<2x1024xf32>,
    %c0_3 = arith.constant 0 : index
    %c0_4 = arith.constant 0 : index
    %2 = vector.load %arg2[%c0_3, %c0_4] : memref<2x1536xf32, #tpu.memory_space<vmem>>, vector<2x1536xf32>
    %c0_5 = arith.constant 0 : index
    %c1024 = arith.constant 1024 : index
    %3 = vector.load %arg3[%c0_5, %c1024] : memref<2x2560xf32, #tpu.memory_space<vmem>>, vector<2x1536xf32>
    tpu.vector_store %arg3[%c0_5, %c1024], %2 {strides = array<i32>} : memref<2x2560xf32, #tpu.memory_space<vmem>>, vector<2x1536xf32>,
    return
  }
  func.func @transform_0(%arg0: i32) -> (i32, i32) {
    %c0_i32 = arith.constant 0 : i32
    %c0_i32_0 = arith.constant 0 : i32
    return %arg0, %c0_i32 : i32, i32
  }
  func.func @transform_1(%arg0: i32) -> (i32, i32) {
    %c0_i32 = arith.constant 0 : i32
    %c0_i32_0 = arith.constant 0 : i32
    return %arg0, %c0_i32 : i32, i32
  }
  func.func @transform_2(%arg0: i32) -> (i32, i32) {
    %c0_i32 = arith.constant 0 : i32
    %c0_i32_0 = arith.constant 0 : i32
    return %arg0, %c0_i32 : i32, i32
  }
}

</mosaic_0001>

<llo_original>
// kernel: tpu_custom_call.1
$region0: #{tpu_custom_call.1}
  #allocation0 [shape = 'u32[]', space=smem, size = 0x4, offset = 0x4, fixed_abs, tag = 'smem constant byte address 0x4 - core index']
  #allocation1 [shape = 'u32[144,128]{1,0:T(1,128)}', space=vmem, size = 0x12000, scoped, tag = 'internal scratch']
  %s0 = inlined_call_operand.hbm [shape: f32[2,1024], index: 0, kind: input, shape index: {}]
  %s1 = inlined_call_operand.hbm [shape: f32[2,1536], index: 1, kind: input, shape index: {}]
  %s2 = inlined_call_operand.hbm [shape: f32[2,2560], index: 2, kind: output, shape index: {}]
  %s3 = sld [smem:[#allocation0]]
  $region26: #{tpu_custom_call.1} parent=0
    _
  %s5 = ssub.s32 1, %s3
  %s6 = scalar_select 0, %s5, %s3
  $region1: #{tpu_custom_call.1} parent=0
    #allocation2 [shape = 'u8[8192]{0}', space=vmem, size = 0x2000, scoped, tag = 'input window, operand 0, single buffered']
    #allocation3 [shape = 's32[1]{0}', space=sflag, size = 0x4, scoped, tag = 'scoped memory for tpu_custom_call.1']
    #allocation4 [shape = 's32[1]{0}', space=sflag, size = 0x4, scoped, tag = 'scoped memory for tpu_custom_call.1']
    #allocation5 [shape = 'u8[12288]{0}', space=vmem, size = 0x3000, scoped, tag = 'input window, operand 1, single buffered']
    #allocation6 [shape = 's32[1]{0}', space=sflag, size = 0x4, scoped, tag = 'scoped memory for tpu_custom_call.1']
    #allocation7 [shape = 'u8[20480]{0}', space=vmem, size = 0x5000, scoped, tag = 'output window, operand 0, single buffered']
    %7 = vsyncpa [#allocation3], 0
    %8 = vsyncpa [#allocation6], 0
    %9 = vsyncpa [#allocation4], 0
    // Predicated region
    $region2: #{tpu_custom_call.1} parent=1 // pred_check
      _
    $region3: #{tpu_custom_call.1} parent=1 // pred_check_branch
      %11 = sbr.rel (0) target = $region5
    $region4: #{tpu_custom_call.1} parent=1 // pred_region
      %s13 = ssub.s32 256, 256
      %14 = vsyncadd [#allocation3], %s13
      %s16 = sshll.u32 [#allocation2], 4
      %s17 = int_to_ptr.vmem [resolvable:$true] %s16
      %19 = dma.hbm_to_vmem [thread:$0]  %s0, 256, %s17, [#allocation3]
    $region5: #{tpu_custom_call.1} parent=1 // pred_fallthru
      _
    // Predicated region
    $region6: #{tpu_custom_call.1} parent=1 // pred_check
      _
    $region7: #{tpu_custom_call.1} parent=1 // pred_check_branch
      %21 = sbr.rel (0) target = $region9
    $region8: #{tpu_custom_call.1} parent=1 // pred_region
      %s23 = ssub.s32 384, 384
      %24 = vsyncadd [#allocation6], %s23
      %s26 = sshll.u32 [#allocation5], 4
      %s27 = int_to_ptr.vmem [resolvable:$true] %s26
      %29 = dma.hbm_to_vmem [thread:$0]  %s1, 384, %s27, [#allocation6]
    $region9: #{tpu_custom_call.1} parent=1 // pred_fallthru
      _
    // Predicated region
    $region10: #{tpu_custom_call.1} parent=1 // pred_check
      _
    $region11: #{tpu_custom_call.1} parent=1 // pred_check_branch
      %31 = sbr.rel (0) target = $region13
    $region12: #{tpu_custom_call.1} parent=1 // pred_region
      %32 = dma.done [#allocation3], 256
    $region13: #{tpu_custom_call.1} parent=1 // pred_fallthru
      _
    // Predicated region
    $region14: #{tpu_custom_call.1} parent=1 // pred_check
      _
    $region15: #{tpu_custom_call.1} parent=1 // pred_check_branch
      %34 = sbr.rel (0) target = $region17
    $region16: #{tpu_custom_call.1} parent=1 // pred_region
      %35 = dma.done [#allocation6], 384
    $region17: #{tpu_custom_call.1} parent=1 // pred_fallthru
      _
    %v36 = vld [vmem:[#allocation2] sm:$0xff]
    %v37 = vld [vmem:[#allocation2 + $0x8] sm:$0xff]
    %38 = vst [vmem:[#allocation7] sm:$0xff] %v36
    %39 = vst [vmem:[#allocation7 + $0x8] sm:$0xff] %v37
    %v40 = vld [vmem:[#allocation5] sm:$0xff]
    %v41 = vld [vmem:[#allocation5 + $0x8] sm:$0xff]
    %v42 = vld [vmem:[#allocation5 + $0x10] sm:$0xff]
    %43 = vst [vmem:[#allocation7 + $0x10] sm:$0xff] %v40
    %44 = vst [vmem:[#allocation7 + $0x18] sm:$0xff] %v41
    %45 = vst [vmem:[#allocation7 + $0x20] sm:$0xff] %v42
    // Predicated region
    $region18: #{tpu_custom_call.1} parent=1 // pred_check
      _
    $region19: #{tpu_custom_call.1} parent=1 // pred_check_branch
      %47 = sbr.rel (0) target = $region21
    $region20: #{tpu_custom_call.1} parent=1 // pred_region
      %s49 = ssub.s32 640, 640
      %50 = vsyncadd [#allocation4], %s49
      %s52 = sshll.u32 [#allocation7], 4
      %s53 = int_to_ptr.vmem [resolvable:$true] %s52
      %55 = dma.vmem_to_hbm [thread:$0]  %s53, 640, %s2, [#allocation4]
    $region21: #{tpu_custom_call.1} parent=1 // pred_fallthru
      _
    // Predicated region
    $region22: #{tpu_custom_call.1} parent=1 // pred_check
      _
    $region23: #{tpu_custom_call.1} parent=1 // pred_check_branch
      %57 = sbr.rel (0) target = $region25
    $region24: #{tpu_custom_call.1} parent=1 // pred_region
      %58 = dma.done [#allocation4], 640
    $region25: #{tpu_custom_call.1} parent=1 // pred_fallthru
      _
    %59 = vsyncpa [#allocation3], 1
    %60 = vsyncpa [#allocation6], 1
    %61 = vsyncpa [#allocation4], 1

</llo_original>
